<compile_context>
chip_gen: v5e
topology: v5e:2x2
jax: 0.10.0
libtpu: 0.0.40
codegen_flags: <defaults>
</compile_context>

<pallas_src>
import functools
import math

import jax
import jax.numpy as jnp
from jax.experimental import pallas as pl
from jax.experimental.pallas import tpu as pltpu


def _round_up(x, m):
    return ((x + m - 1) // m) * m


# ---------------------------------------------------------------------------
# Kernel: one grid step = (model m, batch tile bi) -> full MLP forward in VMEM
# ---------------------------------------------------------------------------
def _list_mlp_kernel(num_layers, final_relu_layer, op, x_ref, *rest):
    out_ref = rest[-1]
    wb = rest[:-1]                                   # (w0, b0, w1, b1, ...)
    h = x_ref[...].astype(jnp.float32)
    for i in range(num_layers):
        if i < final_relu_layer:                     # ReLU inserted BEFORE Linear i
            h = jnp.maximum(h, 0.0)
        w = wb[2 * i][...]                           # (d_in_i, d_out_i), VMEM-resident
        b = wb[2 * i + 1][...].astype(jnp.float32)   # (1, d_out_i)
        # bf16 (param dtype) feeds the MXU; accumulate in f32; bias folded in.
        h = b + jnp.dot(h.astype(w.dtype), w, preferred_element_type=jnp.float32)
    h = op(h)                                        # operation_before_concat
    out_ref[...] = h.astype(out_ref.dtype)


# ---------------------------------------------------------------------------
# Tiling: pick the batch tile first (VMEM-budget aware), pad the batch to it.
# ---------------------------------------------------------------------------
_TM_CANDIDATES = (512, 256, 128, 64, 32, 16, 8)


def _vmem_estimate(tm, d_in_blk, d_out_blk, layer_dims, x_bytes, w_bytes,
                   out_bytes, weight_bufs):
    x_tile = tm * d_in_blk * x_bytes
    out_tile = tm * d_out_blk * out_bytes
    wsum = sum(di * do * w_bytes + do * 4 for di, do in layer_dims)
    max_w = max(max(di, do) for di, do in layer_dims)
    live = 2 * tm * max_w * 4                        # live f32 intermediates
    return 2 * (x_tile + out_tile) + weight_bufs * wsum + live


def _choose_tm(M, d_in_blk, d_out_blk, layer_dims, x_bytes, w_bytes, out_bytes,
               budget):
    """Largest batch tile that fits the VMEM budget; never collapses to tm=8
    just because the batch is an awkward size (the caller pads M up to tm)."""
    m8 = _round_up(M, 8)
    fits = [t for t in _TM_CANDIDATES
            if _vmem_estimate(t, d_in_blk, d_out_blk, layer_dims,
                              x_bytes, w_bytes, out_bytes, 2) <= budget]
    cap = fits[0] if fits else 8
    cands = [t for t in _TM_CANDIDATES if t <= min(cap, m8)]
    if not cands:
        return m8
    # Prefer tm >= 128 when the batch allows it (MXU rows / per-step overhead);
    # among those pick the tile that wastes the least padding (tie -> larger).
    big = [t for t in cands if t >= 128]
    pool = big if big else cands
    return min(pool, key=lambda t: (_round_up(M, t), -t))


# ---------------------------------------------------------------------------
# Wrapper: ListOfModels.forward, fully fused
# ---------------------------------------------------------------------------
def list_of_models_forward(x, stacked_params, *, input_sizes=None,
                           operation_before_concat=None, final_relu=False,
                           block_batch=None):
    """x: (M, D).  stacked_params: list of (W, b) per layer with
    W: (num_models, d_in_l, d_out_l) (already transposed vs torch, bf16 ok),
    b: (num_models, 1, d_out_l) (f32).  All sub-models share layer sizes.
    """
    # TODO(synk): heterogeneous sub-model architectures (different layer_sizes
    # per model) cannot be weight-stacked into one grid; they would need one
    # fused call per distinct architecture.
    op = operation_before_concat if operation_before_concat is not None else (lambda h: h)

    num_layers = len(stacked_params)
    num_models = stacked_params[0][0].shape[0]
    d_out = stacked_params[-1][0].shape[-1]
    final_relu_layer = num_layers if final_relu else num_layers - 1
    layer_dims = [(w.shape[1], w.shape[2]) for (w, _) in stacked_params]
    w_bytes = jnp.dtype(stacked_params[0][0].dtype).itemsize
    x_bytes = jnp.dtype(x.dtype).itemsize
    per_model_w_bytes = sum(di * do * w_bytes + do * 4 for di, do in layer_dims)

    M, D = x.shape
    if input_sizes is None:
        d_in = D
    else:
        assert len(input_sizes) == num_models
        assert all(int(s) == int(input_sizes[0]) for s in input_sizes), (
            "stacked kernel requires equal per-model input slices")
        d_in = int(input_sizes[0])
        assert D == num_models * d_in

    # ---- VMEM budget & batch tile ------------------------------------------
    try:
        vmem_cap = pltpu.get_tpu_info().vmem_capacity_bytes
    except Exception:
        vmem_cap = 64 * 1024 * 1024        # v7x floor; conservative elsewhere
    budget = int(vmem_cap * 0.7)

    tm = block_batch or _choose_tm(M, d_in, d_out, layer_dims,
                                   x_bytes, w_bytes, x_bytes, budget)
    m_pad = _round_up(max(M, 8), tm)
    if m_pad != M:
        x = jnp.pad(x, ((0, m_pad - M), (0, 0)))
    n_bt = m_pad // tm

    # ---- grid order: minimise replicated HBM traffic / keep megacore busy ---
    if num_models == 1:
        model_outer = False                # batch axis leads -> both v7x cores work
    elif input_sizes is not None:
        model_outer = True                 # weights fetched once; x is per-model anyway
    else:
        # Shared x is re-DMA'd per model if the model axis is outermost; weights
        # are re-DMA'd per batch tile if it is innermost. Pick the cheaper.
        x_all_bytes = m_pad * D * x_bytes
        all_w_bytes = num_models * per_model_w_bytes
        t_model_outer = (x_all_bytes if n_bt == 1 else num_models * x_all_bytes) + all_w_bytes
        t_batch_outer = x_all_bytes + n_bt * all_w_bytes
        model_outer = t_model_outer <= t_batch_outer

    def imap(fn):
        if model_outer:
            return lambda m, bi: fn(m, bi)
        return lambda bi, m: fn(m, bi)

    grid = (num_models, n_bt) if model_outer else (n_bt, num_models)

    # ---- input spec ----------------------------------------------------------
    if input_sizes is None:
        x_in = x
        x_spec = pl.BlockSpec((tm, D), imap(lambda m, bi: (bi, 0)))
    elif d_in % 128 == 0 or num_models == 1:
        # Read each model's column slice straight out of the original (M, D) x:
        # lane-dense blocks, no wrapper transpose / extra HBM round-trip.
        x_in = x
        x_spec = pl.BlockSpec((tm, d_in), imap(lambda m, bi: (bi, m)))
    else:
        # Narrow (<128-lane) per-model slices: present them as full-extent
        # blocks via a single wrapper reshape/transpose (fallback only).
        x_in = x.reshape(m_pad, num_models, d_in).transpose(1, 0, 2)
        x_spec = pl.BlockSpec((None, tm, d_in), imap(lambda m, bi: (m, bi, 0)))

    # ---- weight / bias specs: indexed by the model axis only -----------------
    # Weight blocks only change when the model index changes; when they are
    # large, single-buffer them (prefetching the next model's weights buys
    # little and halves their VMEM footprint — decisive on v7x's 64 MiB).
    single_buffer_weights = model_outer and per_model_w_bytes > (8 << 20)
    wkw = dict(pipeline_mode=pl.Buffered(1)) if single_buffer_weights else {}

    in_specs = [x_spec]
    flat_params = []
    for (w, b) in stacked_params:
        nm_w, di, do = w.shape
        assert nm_w == num_models and b.shape == (num_models, 1, do)
        in_specs.append(pl.BlockSpec((None, di, do), imap(lambda m, bi: (m, 0, 0)), **wkw))
        in_specs.append(pl.BlockSpec((None, 1, do), imap(lambda m, bi: (m, 0, 0)), **wkw))
        flat_params.extend([w, b])

    # ---- output spec: write the concatenated layout directly when lane-dense -
    direct_concat = (d_out % 128 == 0) or (num_models == 1)
    if direct_concat:
        out_shape = jax.ShapeDtypeStruct((m_pad, num_models * d_out), x.dtype)
        out_spec = pl.BlockSpec((tm, d_out), imap(lambda m, bi: (bi, m)))
    else:
        out_shape = jax.ShapeDtypeStruct((num_models, m_pad, d_out), x.dtype)
        out_spec = pl.BlockSpec((None, tm, d_out), imap(lambda m, bi: (m, bi, 0)))

    # ---- scoped VMEM limit from the actual footprint -------------------------
    weight_bufs = 1 if single_buffer_weights else 2
    needed = _vmem_estimate(tm, d_in, d_out, layer_dims, x_bytes, w_bytes,
                            x_bytes, weight_bufs)
    vmem_limit = int(min(vmem_cap * 0.9,
                         max(32 << 20, needed * 1.25 + (4 << 20))))

    kernel = functools.partial(_list_mlp_kernel, num_layers, final_relu_layer, op)

    out = pl.pallas_call(
        kernel,
        out_shape=out_shape,
        grid=grid,
        in_specs=in_specs,
        out_specs=out_spec,
        compiler_params=pltpu.CompilerParams(
            dimension_semantics=("parallel", "parallel"),
            vmem_limit_bytes=vmem_limit,
        ),
    )(x_in, *flat_params)

    if not direct_concat:
        # Fallback only (d_out not a multiple of 128): reassemble torch.cat order.
        out = out.transpose(1, 0, 2).reshape(m_pad, num_models * d_out)
    return out[:M]


# ---------------------------------------------------------------------------
# Params + plain-JAX reference
# ---------------------------------------------------------------------------
def init_stacked_mlp_params(key, num_models, layer_sizes, param_dtype=jnp.bfloat16):
    """Stacked params matching torch.nn.Linear init ranges; weights stored
    transposed to (in, out) for x @ W^T, in `param_dtype` (bf16 feeds the MXU
    at full rate with an f32 accumulator); biases kept in f32."""
    params = []
    for i in range(len(layer_sizes) - 1):
        in_f, out_f = int(layer_sizes[i]), int(layer_sizes[i + 1])
        key, kw, kb = jax.random.split(key, 3)
        bound = 1.0 / math.sqrt(in_f)
        w = jax.random.uniform(kw, (num_models, in_f, out_f), jnp.float32,
                               -bound, bound).astype(param_dtype)
        b = jax.random.uniform(kb, (num_models, 1, out_f), jnp.float32, -bound, bound)
        params.append((w, b))
    return params


def _mlp_reference(x, params, final_relu):
    num_layers = len(params)
    final_relu_layer = num_layers if final_relu else num_layers - 1
    h = x.astype(jnp.float32)
    for i, (w, b) in enumerate(params):
        if i < final_relu_layer:
            h = jnp.maximum(h, 0.0)
        h = b.astype(jnp.float32) + jnp.dot(h.astype(w.dtype), w,
                                            preferred_element_type=jnp.float32)
    return h


def list_of_models_reference(x, stacked_params, *, input_sizes=None,
                             operation_before_concat=None, final_relu=False):
    op = operation_before_concat if operation_before_concat is not None else (lambda h: h)
    num_models = stacked_params[0][0].shape[0]
    outs, s = [], 0
    for m in range(num_models):
        if input_sizes is None:
            xm = x
        else:
            xm = x[:, s:s + int(input_sizes[m])]
            s += int(input_sizes[m])
        params_m = [(w[m], b[m]) for (w, b) in stacked_params]
        outs.append(op(_mlp_reference(xm, params_m, final_relu)))
    return jnp.concatenate(outs, axis=-1)


# ---------------------------------------------------------------------------
if __name__ == "__main__":
    key = jax.random.PRNGKey(0)

    # Mode 1: input_sizes given, 128-wide per-model slices -> direct column
    # reads + direct concatenated output (no wrapper transposes).
    num_models, per_model_in, batch = 2, 128, 16
    layer_sizes = [per_model_in, 128, 128]
    input_sizes = [per_model_in] * num_models
    key, kx = jax.random.split(key)
    x = jax.random.normal(kx, (batch, sum(input_sizes)), jnp.float32)
    params = init_stacked_mlp_params(key, num_models, layer_sizes)

    out = jax.block_until_ready(
        list_of_models_forward(x, params, input_sizes=input_sizes))
    ref = list_of_models_reference(x, params, input_sizes=input_sizes)
    assert out.shape == (batch, num_models * layer_sizes[-1])
    assert jnp.allclose(out, ref, atol=5e-3, rtol=5e-3)

    # Mode 1b: narrow (64-wide) per-model slices -> transposed-input fallback.
    layer_sizes_n = [64, 128, 128]
    input_sizes_n = [64] * num_models
    key, kx2 = jax.random.split(key)
    x_n = jax.random.normal(kx2, (batch, sum(input_sizes_n)), jnp.float32)
    params_n = init_stacked_mlp_params(jax.random.PRNGKey(7), num_models, layer_sizes_n)
    out_n = jax.block_until_ready(
        list_of_models_forward(x_n, params_n, input_sizes=input_sizes_n))
    ref_n = list_of_models_reference(x_n, params_n, input_sizes=input_sizes_n)
    assert jnp.allclose(out_n, ref_n, atol=5e-3, rtol=5e-3)

    # Mode 2: input_sizes=None -> every model sees the full x.
    params_full = init_stacked_mlp_params(jax.random.PRNGKey(1), num_models,
                                          [x.shape[1], 128, 128])
    out2 = jax.block_until_ready(list_of_models_forward(x, params_full))
    ref2 = list_of_models_reference(x, params_full)
    assert out2.shape == (batch, num_models * 128)
    assert jnp.allclose(out2, ref2, atol=5e-3, rtol=5e-3)

    print("KERNEL_OK")
</pallas_src>

<mosaic_0001>
module attributes {stable_mosaic.version = 11 : i64} {
  func.func @_list_mlp_kernel(%arg0: i32, %arg1: i32, %arg2: memref<16x128xf32, #tpu.memory_space<vmem>>, %arg3: memref<1x128x128xbf16, #tpu.memory_space<vmem>>, %arg4: memref<1x1x128xf32, #tpu.memory_space<vmem>>, %arg5: memref<1x128x128xbf16, #tpu.memory_space<vmem>>, %arg6: memref<1x1x128xf32, #tpu.memory_space<vmem>>, %arg7: memref<16x128xf32, #tpu.memory_space<vmem>>) attributes {dimension_semantics = [#tpu.dimension_semantics<parallel>, #tpu.dimension_semantics<parallel>], iteration_bounds = array<i64: 2, 1>, scalar_prefetch = 0 : i64, scratch_operands = 0 : i64, tpu.core_type = #tpu.core_type<tc>, window_params = [{transform_indices = @transform_0, window_bounds = array<i64: 16, 128>}, {transform_indices = @transform_1, window_bounds = array<i64: 1, 128, 128>}, {transform_indices = @transform_2, window_bounds = array<i64: 1, 1, 128>}, {transform_indices = @transform_3, window_bounds = array<i64: 1, 128, 128>}, {transform_indices = @transform_4, window_bounds = array<i64: 1, 1, 128>}, {transform_indices = @transform_5, window_bounds = array<i64: 16, 128>}]} {
    %c0 = arith.constant 0 : index
    %c0_0 = arith.constant 0 : index
    %0 = vector.load %arg2[%c0, %c0_0] : memref<16x128xf32, #tpu.memory_space<vmem>>, vector<16x128xf32>
    %cst = arith.constant 0.000000e+00 : f32
    %1 = vector.broadcast %cst : f32 to vector<16x128xf32>
    %2 = arith.maximumf %0, %1 : vector<16x128xf32>
    %c0_1 = arith.constant 0 : index
    %c0_2 = arith.constant 0 : index
    %c0_3 = arith.constant 0 : index
    %3 = vector.load %arg3[%c0_1, %c0_2, %c0_3] : memref<1x128x128xbf16, #tpu.memory_space<vmem>>, vector<1x128x128xbf16>
    %4 = vector.shape_cast %3 : vector<1x128x128xbf16> to vector<128x128xbf16>
    %c0_4 = arith.constant 0 : index
    %c0_5 = arith.constant 0 : index
    %c0_6 = arith.constant 0 : index
    %5 = vector.load %arg4[%c0_4, %c0_5, %c0_6] : memref<1x1x128xf32, #tpu.memory_space<vmem>>, vector<1x1x128xf32>
    %6 = vector.shape_cast %5 : vector<1x1x128xf32> to vector<1x128xf32>
    %7 = arith.truncf %2 : vector<16x128xf32> to vector<16x128xbf16>
    %cst_7 = arith.constant dense<0.000000e+00> : vector<16x128xf32>
    %8 = tpu.matmul %7, %4, %cst_7 {dimension_numbers = #tpu.dot_dimension_numbers<[1], [0], [0], [1], [0, 0, 1, 1], [], []>} : vector<16x128xbf16>, vector<128x128xbf16>, vector<16x128xf32> -> vector<16x128xf32>
    %9 = vector.broadcast %6 : vector<1x128xf32> to vector<16x128xf32>
    %10 = arith.addf %9, %8 : vector<16x128xf32>
    %c0_8 = arith.constant 0 : index
    %c0_9 = arith.constant 0 : index
    %c0_10 = arith.constant 0 : index
    %11 = vector.load %arg5[%c0_8, %c0_9, %c0_10] : memref<1x128x128xbf16, #tpu.memory_space<vmem>>, vector<1x128x128xbf16>
    %12 = vector.shape_cast %11 : vector<1x128x128xbf16> to vector<128x128xbf16>
    %c0_11 = arith.constant 0 : index
    %c0_12 = arith.constant 0 : index
    %c0_13 = arith.constant 0 : index
    %13 = vector.load %arg6[%c0_11, %c0_12, %c0_13] : memref<1x1x128xf32, #tpu.memory_space<vmem>>, vector<1x1x128xf32>
    %14 = vector.shape_cast %13 : vector<1x1x128xf32> to vector<1x128xf32>
    %15 = arith.truncf %10 : vector<16x128xf32> to vector<16x128xbf16>
    %cst_14 = arith.constant dense<0.000000e+00> : vector<16x128xf32>
    %16 = tpu.matmul %15, %12, %cst_14 {dimension_numbers = #tpu.dot_dimension_numbers<[1], [0], [0], [1], [0, 0, 1, 1], [], []>} : vector<16x128xbf16>, vector<128x128xbf16>, vector<16x128xf32> -> vector<16x128xf32>
    %17 = vector.broadcast %14 : vector<1x128xf32> to vector<16x128xf32>
    %18 = arith.addf %17, %16 : vector<16x128xf32>
    %c0_15 = arith.constant 0 : index
    %c0_16 = arith.constant 0 : index
    %19 = vector.load %arg7[%c0_15, %c0_16] : memref<16x128xf32, #tpu.memory_space<vmem>>, vector<16x128xf32>
    tpu.vector_store %arg7[%c0_15, %c0_16], %18 {strides = array<i32>} : memref<16x128xf32, #tpu.memory_space<vmem>>, vector<16x128xf32>,
    return
  }
  func.func @transform_0(%arg0: i32, %arg1: i32) -> (i32, i32) {
    %c0_i32 = arith.constant 0 : i32
    return %arg1, %arg0 : i32, i32
  }
  func.func @transform_1(%arg0: i32, %arg1: i32) -> (i32, i32, i32) {
    %c0_i32 = arith.constant 0 : i32
    %c0_i32_0 = arith.constant 0 : i32
    %c0_i32_1 = arith.constant 0 : i32
    return %arg0, %c0_i32, %c0_i32_0 : i32, i32, i32
  }
  func.func @transform_2(%arg0: i32, %arg1: i32) -> (i32, i32, i32) {
    %c0_i32 = arith.constant 0 : i32
    %c0_i32_0 = arith.constant 0 : i32
    %c0_i32_1 = arith.constant 0 : i32
    return %arg0, %c0_i32, %c0_i32_0 : i32, i32, i32
  }
  func.func @transform_3(%arg0: i32, %arg1: i32) -> (i32, i32, i32) {
    %c0_i32 = arith.constant 0 : i32
    %c0_i32_0 = arith.constant 0 : i32
    %c0_i32_1 = arith.constant 0 : i32
    return %arg0, %c0_i32, %c0_i32_0 : i32, i32, i32
  }
  func.func @transform_4(%arg0: i32, %arg1: i32) -> (i32, i32, i32) {
    %c0_i32 = arith.constant 0 : i32
    %c0_i32_0 = arith.constant 0 : i32
    %c0_i32_1 = arith.constant 0 : i32
    return %arg0, %c0_i32, %c0_i32_0 : i32, i32, i32
  }
  func.func @transform_5(%arg0: i32, %arg1: i32) -> (i32, i32) {
    %c0_i32 = arith.constant 0 : i32
    return %arg1, %arg0 : i32, i32
  }
}

</mosaic_0001>

<llo_original>
// kernel: tpu_custom_call.1
$region0: #{tpu_custom_call.1}
  #allocation0 [shape = 'u32[]', space=smem, size = 0x4, offset = 0x4, fixed_abs, tag = 'smem constant byte address 0x4 - core index']
  #allocation1 [shape = 'u32[72,128]{1,0:T(1,128)}', space=vmem, size = 0x9000, scoped, tag = 'internal scratch']
  %s0 = inlined_call_operand.hbm [shape: f32[16,256], index: 0, kind: input, shape index: {}]
  %s1 = inlined_call_operand.hbm [shape: bf16[2,128,128], index: 1, kind: input, shape index: {}]
  %s2 = inlined_call_operand.hbm [shape: f32[2,1,128], index: 2, kind: input, shape index: {}]
  %s3 = inlined_call_operand.hbm [shape: bf16[2,128,128], index: 3, kind: input, shape index: {}]
  %s4 = inlined_call_operand.vmem [shape: f32[2,1,128], index: 4, kind: input, shape index: {}]
  %s5 = inlined_call_operand.hbm [shape: f32[16,256], index: 5, kind: output, shape index: {}]
  %s6 = sld [smem:[#allocation0]]
  $region69: #{tpu_custom_call.1} parent=0
    _
  %s8 = ssub.s32 1, %s6
  %s9 = scalar_select 0, %s8, %s6
  $region1: #{tpu_custom_call.1} parent=0
    #allocation2 [shape = 'u8[16384]{0}', space=vmem, size = 0x4000, scoped, tag = 'input window, operand 0']
    #allocation3 [shape = 's32[2]{0}', space=sflag, size = 0x8, scoped, tag = 'scoped memory for tpu_custom_call.1']
    #allocation4 [shape = 's32[2]{0}', space=sflag, size = 0x8, scoped, tag = 'scoped memory for tpu_custom_call.1']
    #allocation5 [shape = 'u8[65536]{0}', space=vmem, size = 0x10000, scoped, tag = 'input window, operand 1']
    #allocation6 [shape = 's32[2]{0}', space=sflag, size = 0x8, scoped, tag = 'scoped memory for tpu_custom_call.1']
    #allocation7 [shape = 'u8[1024]{0}', space=vmem, size = 0x400, scoped, tag = 'input window, operand 2']
    #allocation8 [shape = 'u8[65536]{0}', space=vmem, size = 0x10000, scoped, tag = 'input window, operand 3']
    #allocation9 [shape = 's32[2]{0}', space=sflag, size = 0x8, scoped, tag = 'scoped memory for tpu_custom_call.1']
    #allocation10 [shape = 'u8[16384]{0}', space=vmem, size = 0x4000, scoped, tag = 'output window, operand 0']
    %10 = vsyncpa [#allocation3], 0
    %s11 = scalar_lea.sflag [#allocation3], 1
    %12 = vsyncpa %s11, 0
    %13 = vsyncpa [#allocation6], 0
    %s14 = scalar_lea.sflag [#allocation6], 1
    %15 = vsyncpa %s14, 0
    %16 = vsyncpa [#allocation9], 0
    %s17 = scalar_lea.sflag [#allocation9], 1
    %18 = vsyncpa %s17, 0
    %19 = vsyncpa [#allocation4], 0
    %s20 = scalar_lea.sflag [#allocation4], 1
    %21 = vsyncpa %s20, 0
    loop: start=0, step=1, limit=4
    $region2: #{tpu_custom_call.1} parent=1 // loop_pre_header
      _
    $region3: #{tpu_custom_call.1} parent=1 // loop_header
      %s23 = sphi 0, %s27
      %p24 = scmp.ge.s32.totalorder %s23, 4
      %s30 = sphi 0, %s42
      %s31 = sphi 0, %s38
      %s32 = sphi 0, %s30
      %s33 = sphi 0, %s31
      %s34 = sphi 0, %s32
      %s35 = sphi 0, %s33
      %s47 = sphi 0, %s49
      %s50 = sphi 0, %s47
      %s51 = sphi 0, %s50
      %s67 = sphi 0, %s51
      %s73 = sphi 0, %s75
      %s76 = sphi 0, %s73
      %s77 = sphi 0, %s76
      %s93 = sphi 0, %s77
      %s99 = sphi 0, %s101
      %s102 = sphi 0, %s99
      %s103 = sphi 0, %s102
      %s119 = sphi 0, %s103
      %s125 = sphi 0, %s127
      %s128 = sphi 0, %s125
      %s129 = sphi 0, %s128
      %s145 = sphi 0, %s129
      %s151 = sphi 0, %s153
      %s154 = sphi 0, %s151
      %s155 = sphi 0, %s154
      %s171 = sphi 0, %s155
      %s179 = sphi 0, %s181
      %s182 = sphi 0, %s179
      %s183 = sphi 0, %s182
      %s199 = sphi 0, %s183
    $region4: #{tpu_custom_call.1} parent=1 // loop_header_branch
      %26 = sbr.rel (%p24) target = $region8
    $region5: #{tpu_custom_call.1} parent=1 // loop_body
      %s28 = ssub.s32 %s23, 1
      %s29 = ssub.s32 %s23, 2
      %s36 = sadd.s32 1, %s31
      %p37 = scmp.ge.s32.totalorder %s36, 1
      %s38 = scalar_select %p37, 0, %s36
      %s39 = sadd.s32 1, %s30
      %s40 = scalar_select %p37, %s39, %s30
      %p41 = scmp.ge.s32.totalorder %s40, 2
      %s42 = scalar_select %p41, 0, %s40
      %s43 = ssub.s32 %s31, %s38
      %s44 = ssub.s32 %s30, %s42
      %s45 = sor.u32 %s43, %s44
      %p46 = scmp.eq.s32.totalorder %s45, 0
      %s48 = sadd.s32 %s47, 1
      %s49 = scalar_select %p46, %s47, %s48
      %p52 = pneg %p46
      %p53 = scmp.eq.s32.totalorder %s23, 1
      %p54 = por %p52, %p53
      %p55 = scmp.ne.s32.totalorder %s47, %s50
      %p56 = scmp.eq.s32.totalorder %s23, 0
      %p57 = por %p55, %p56
      %p58 = scmp.ne.s32.totalorder %s47, %s50
      %p59 = scmp.eq.s32.totalorder %s28, 1
      %p60 = por %p58, %p59
      %p61 = scmp.ne.s32.totalorder %s50, %s51
      %p62 = scmp.eq.s32.totalorder %s28, 0
      %p63 = por %p61, %p62
      %p64 = scmp.ne.s32.totalorder %s50, %s51
      %p65 = scmp.eq.s32.totalorder %s29, 1
      %p66 = por %p64, %p65
      %p68 = scmp.ne.s32.totalorder %s51, %s67
      %p69 = scmp.eq.s32.totalorder %s29, 0
      %p70 = por %p68, %p69
      %s71 = ssub.s32 %s30, %s42
      %p72 = scmp.eq.s32.totalorder %s71, 0
      %s74 = sadd.s32 %s73, 1
      %s75 = scalar_select %p72, %s73, %s74
      %p78 = pneg %p72
      %p79 = scmp.eq.s32.totalorder %s23, 1
      %p80 = por %p78, %p79
      %p81 = scmp.ne.s32.totalorder %s73, %s76
      %p82 = scmp.eq.s32.totalorder %s23, 0
      %p83 = por %p81, %p82
      %p84 = scmp.ne.s32.totalorder %s73, %s76
      %p85 = scmp.eq.s32.totalorder %s28, 1
      %p86 = por %p84, %p85
      %p87 = scmp.ne.s32.totalorder %s76, %s77
      %p88 = scmp.eq.s32.totalorder %s28, 0
      %p89 = por %p87, %p88
      %p90 = scmp.ne.s32.totalorder %s76, %s77
      %p91 = scmp.eq.s32.totalorder %s29, 1
      %p92 = por %p90, %p91
      %p94 = scmp.ne.s32.totalorder %s77, %s93
      %p95 = scmp.eq.s32.totalorder %s29, 0
      %p96 = por %p94, %p95
      %s97 = ssub.s32 %s30, %s42
      %p98 = scmp.eq.s32.totalorder %s97, 0
      %s100 = sadd.s32 %s99, 1
      %s101 = scalar_select %p98, %s99, %s100
      %p104 = pneg %p98
      %p105 = scmp.eq.s32.totalorder %s23, 1
      %p106 = por %p104, %p105
      %p107 = scmp.ne.s32.totalorder %s99, %s102
      %p108 = scmp.eq.s32.totalorder %s23, 0
      %p109 = por %p107, %p108
      %p110 = scmp.ne.s32.totalorder %s99, %s102
      %p111 = scmp.eq.s32.totalorder %s28, 1
      %p112 = por %p110, %p111
      %p113 = scmp.ne.s32.totalorder %s102, %s103
      %p114 = scmp.eq.s32.totalorder %s28, 0
      %p115 = por %p113, %p114
      %p116 = scmp.ne.s32.totalorder %s102, %s103
      %p117 = scmp.eq.s32.totalorder %s29, 1
      %p118 = por %p116, %p117
      %p120 = scmp.ne.s32.totalorder %s103, %s119
      %p121 = scmp.eq.s32.totalorder %s29, 0
      %p122 = por %p120, %p121
      %s123 = ssub.s32 %s30, %s42
      %p124 = scmp.eq.s32.totalorder %s123, 0
      %s126 = sadd.s32 %s125, 1
      %s127 = scalar_select %p124, %s125, %s126
      %p130 = pneg %p124
      %p131 = scmp.eq.s32.totalorder %s23, 1
      %p132 = por %p130, %p131
      %p133 = scmp.ne.s32.totalorder %s125, %s128
      %p134 = scmp.eq.s32.totalorder %s23, 0
      %p135 = por %p133, %p134
      %p136 = scmp.ne.s32.totalorder %s125, %s128
      %p137 = scmp.eq.s32.totalorder %s28, 1
      %p138 = por %p136, %p137
      %p139 = scmp.ne.s32.totalorder %s128, %s129
      %p140 = scmp.eq.s32.totalorder %s28, 0
      %p141 = por %p139, %p140
      %p142 = scmp.ne.s32.totalorder %s128, %s129
      %p143 = scmp.eq.s32.totalorder %s29, 1
      %p144 = por %p142, %p143
      %p146 = scmp.ne.s32.totalorder %s129, %s145
      %p147 = scmp.eq.s32.totalorder %s29, 0
      %p148 = por %p146, %p147
      %s149 = ssub.s32 %s30, %s42
      %p150 = scmp.eq.s32.totalorder %s149, 0
      %s152 = sadd.s32 %s151, 1
      %s153 = scalar_select %p150, %s151, %s152
      %p156 = pneg %p150
      %p157 = scmp.eq.s32.totalorder %s23, 1
      %p158 = por %p156, %p157
      %p159 = scmp.ne.s32.totalorder %s151, %s154
      %p160 = scmp.eq.s32.totalorder %s23, 0
      %p161 = por %p159, %p160
      %p162 = scmp.ne.s32.totalorder %s151, %s154
      %p163 = scmp.eq.s32.totalorder %s28, 1
      %p164 = por %p162, %p163
      %p165 = scmp.ne.s32.totalorder %s154, %s155
      %p166 = scmp.eq.s32.totalorder %s28, 0
      %p167 = por %p165, %p166
      %p168 = scmp.ne.s32.totalorder %s154, %s155
      %p169 = scmp.eq.s32.totalorder %s29, 1
      %p170 = por %p168, %p169
      %p172 = scmp.ne.s32.totalorder %s155, %s171
      %p173 = scmp.eq.s32.totalorder %s29, 0
      %p174 = por %p172, %p173
      %s175 = ssub.s32 %s31, %s38
      %s176 = ssub.s32 %s30, %s42
      %s177 = sor.u32 %s175, %s176
      %p178 = scmp.eq.s32.totalorder %s177, 0
      %s180 = sadd.s32 %s179, 1
      %s181 = scalar_select %p178, %s179, %s180
      %p184 = pneg %p178
      %p185 = scmp.eq.s32.totalorder %s23, 1
      %p186 = por %p184, %p185
      %p187 = scmp.ne.s32.totalorder %s179, %s182
      %p188 = scmp.eq.s32.totalorder %s23, 0
      %p189 = por %p187, %p188
      %p190 = scmp.ne.s32.totalorder %s179, %s182
      %p191 = scmp.eq.s32.totalorder %s28, 1
      %p192 = por %p190, %p191
      %p193 = scmp.ne.s32.totalorder %s182, %s183
      %p194 = scmp.eq.s32.totalorder %s28, 0
      %p195 = por %p193, %p194
      %p196 = scmp.ne.s32.totalorder %s182, %s183
      %p197 = scmp.eq.s32.totalorder %s29, 1
      %p198 = por %p196, %p197
      %p200 = scmp.ne.s32.totalorder %s183, %s199
      %p201 = scmp.eq.s32.totalorder %s29, 0
      %p202 = por %p200, %p201
      %p203 = scmp.le.s32.totalorder 1, %s23
      %p204 = scmp.lt.s32.totalorder %s23, 3
      %p205 = pnand %p203, %p204
      %p206 = pneg %p205
      // Predicated region
      $region9: #{tpu_custom_call.1} parent=5 // pred_check
        _
      $region10: #{tpu_custom_call.1} parent=5 // pred_check_branch
        %208 = sbr.rel (%p205) target = $region12
      $region11: #{tpu_custom_call.1} parent=5 // pred_region
        %s209 = ssub.s32 %s23, 1
      $region12: #{tpu_custom_call.1} parent=5 // pred_fallthru
        _
      %p210 = scmp.lt.s32.totalorder %s23, 2
      // Predicated region
      $region13: #{tpu_custom_call.1} parent=5 // pred_check
        %p211 = pneg %p210
      $region14: #{tpu_custom_call.1} parent=5 // pred_check_branch
        %213 = sbr.rel (%p211) target = $region16
      $region15: #{tpu_custom_call.1} parent=5 // pred_region
        // Predicated region
        $region17: #{tpu_custom_call.1} parent=15 // pred_check
          %p214 = pneg %p57
        $region18: #{tpu_custom_call.1} parent=15 // pred_check_branch
          %216 = sbr.rel (%p214) target = $region20
        $region19: #{tpu_custom_call.1} parent=15 // pred_region
          %s217 = sand.u32 %s47, 1
          %s218 = scalar_lea.sflag [#allocation3], %s217
          %s219 = sand.u32 %s47, 1
          %s220 = smul.addr %s219, 16
          %s221 = scalar_lea.vmem [#allocation2], %s220
          %s222 = smul.u32 2, %s31
          %224 = vsyncadd %s218, 0
          %s225 = smul.addr %s222, 2
          %s226 = sadd.s32 %s30, %s225
          %s227 = smul.addr %s226, 8
          %s228 = scalar_lea.hbm %s0, %s227
          %s229 = sshll.u32 %s228, 4
          %s230 = int_to_ptr.hbm [resolvable:$true] %s229
          %s231 = sshll.u32 %s221, 4
          %s232 = int_to_ptr.vmem [resolvable:$true] %s231
          %237 = dma.hbm_to_vmem [thread:$0]  %s230, 256, %s232, %s218, 256, 128, 8
        $region20: #{tpu_custom_call.1} parent=15 // pred_fallthru
          _
        // Predicated region
        $region21: #{tpu_custom_call.1} parent=15 // pred_check
          %p238 = pneg %p83
        $region22: #{tpu_custom_call.1} parent=15 // pred_check_branch
          %240 = sbr.rel (%p238) target = $region24
        $region23: #{tpu_custom_call.1} parent=15 // pred_region
          %s241 = sand.u32 %s23, 1
          %s242 = scalar_lea.sflag [#allocation6], %s241
          %s243 = sand.u32 %s73, 1
          %s244 = smul.addr %s243, 64
          %s245 = scalar_lea.vmem [#allocation5], %s244
          %247 = vsyncadd %s242, 0
          %s248 = smul.addr %s30, 16
          %s249 = smul.addr %s248, 4
          %s250 = scalar_lea.hbm %s1, %s249
          %s251 = sshll.u32 %s250, 4
          %s252 = int_to_ptr.hbm [resolvable:$true] %s251
          %s253 = sshll.u32 %s245, 4
          %s254 = int_to_ptr.vmem [resolvable:$true] %s253
          %259 = dma.hbm_to_vmem [thread:$0]  %s252, 1024, %s254, %s242, 64, 64, 4
        $region24: #{tpu_custom_call.1} parent=15 // pred_fallthru
          _
        // Predicated region
        $region25: #{tpu_custom_call.1} parent=15 // pred_check
          %p260 = pneg %p109
        $region26: #{tpu_custom_call.1} parent=15 // pred_check_branch
          %262 = sbr.rel (%p260) target = $region28
        $region27: #{tpu_custom_call.1} parent=15 // pred_region
          %s263 = sand.u32 %s23, 1
          %s264 = scalar_lea.sflag [#allocation6], %s263
          %s265 = sand.u32 %s99, 1
          %s266 = scalar_lea.vmem [#allocation7], %s265
          %268 = vsyncadd %s264, 0
          %s269 = scalar_lea.hbm %s2, %s30
          %s271 = sshll.u32 %s269, 4
          %s272 = int_to_ptr.hbm [resolvable:$true] %s271
          %s273 = sshll.u32 %s266, 4
          %s274 = int_to_ptr.vmem [resolvable:$true] %s273
          %276 = dma.hbm_to_vmem [thread:$0]  %s272, 16, %s274, %s264
        $region28: #{tpu_custom_call.1} parent=15 // pred_fallthru
          _
        // Predicated region
        $region29: #{tpu_custom_call.1} parent=15 // pred_check
          %p277 = pneg %p135
        $region30: #{tpu_custom_call.1} parent=15 // pred_check_branch
          %279 = sbr.rel (%p277) target = $region32
        $region31: #{tpu_custom_call.1} parent=15 // pred_region
          %s280 = sand.u32 %s125, 1
          %s281 = scalar_lea.sflag [#allocation9], %s280
          %s282 = sand.u32 %s125, 1
          %s283 = smul.addr %s282, 64
          %s284 = scalar_lea.vmem [#allocation8], %s283
          %286 = vsyncadd %s281, 0
          %s287 = smul.addr %s30, 16
          %s288 = smul.addr %s287, 4
          %s289 = scalar_lea.hbm %s3, %s288
          %s290 = sshll.u32 %s289, 4
          %s291 = int_to_ptr.hbm [resolvable:$true] %s290
          %s292 = sshll.u32 %s284, 4
          %s293 = int_to_ptr.vmem [resolvable:$true] %s292
          %298 = dma.hbm_to_vmem [thread:$0]  %s291, 1024, %s293, %s281, 64, 64, 4
        $region32: #{tpu_custom_call.1} parent=15 // pred_fallthru
          _
        // Predicated region
        $region33: #{tpu_custom_call.1} parent=15 // pred_check
          %p299 = pneg %p161
        $region34: #{tpu_custom_call.1} parent=15 // pred_check_branch
          %301 = sbr.rel (%p299) target = $region36
        $region35: #{tpu_custom_call.1} parent=15 // pred_region
          %p302 = scmp.lt.s32.totalorder %s30, 1
          %s303 = scalar_select %p302, %s30, 1
          %s304 = scalar_lea.vmem %s4, %s303
        $region36: #{tpu_custom_call.1} parent=15 // pred_fallthru
          _
      $region16: #{tpu_custom_call.1} parent=5 // pred_fallthru
        _
      %p305 = scmp.le.s32.totalorder 1, %s23
      %p306 = scmp.lt.s32.totalorder %s23, 3
      %p307 = pnand %p305, %p306
      %p308 = pneg %p307
      // Predicated region
      $region37: #{tpu_custom_call.1} parent=5 // pred_check
        _
      $region38: #{tpu_custom_call.1} parent=5 // pred_check_branch
        %310 = sbr.rel (%p307) target = $region40
      $region39: #{tpu_custom_call.1} parent=5 // pred_region
        %s311 = ssub.s32 %s23, 1
        %s312 = sand.u32 %s50, 1
        %s313 = scalar_lea.sflag [#allocation3], %s312
        %s314 = sand.u32 %s50, 1
        %s315 = smul.addr %s314, 16
        %s316 = scalar_lea.vmem [#allocation2], %s315
        // Predicated region
        $region41: #{tpu_custom_call.1} parent=39 // pred_check
          %p317 = pneg %p63
        $region42: #{tpu_custom_call.1} parent=39 // pred_check_branch
          %319 = sbr.rel (%p317) target = $region44
        $region43: #{tpu_custom_call.1} parent=39 // pred_region
          %321 = dma.done %s313, 256
        $region44: #{tpu_custom_call.1} parent=39 // pred_fallthru
          _
        %s322 = sand.u32 %s28, 1
        %s323 = scalar_lea.sflag [#allocation6], %s322
        %s324 = sand.u32 %s76, 1
        %s325 = smul.addr %s324, 64
        %s326 = scalar_lea.vmem [#allocation5], %s325
        // Predicated region
        $region45: #{tpu_custom_call.1} parent=39 // pred_check
          %p327 = pneg %p89
        $region46: #{tpu_custom_call.1} parent=39 // pred_check_branch
          %329 = sbr.rel (%p327) target = $region48
        $region47: #{tpu_custom_call.1} parent=39 // pred_region
          %331 = dma.done %s323, 1024
        $region48: #{tpu_custom_call.1} parent=39 // pred_fallthru
          _
        %s332 = sand.u32 %s28, 1
        %s333 = scalar_lea.sflag [#allocation6], %s332
        %s334 = sand.u32 %s102, 1
        %s335 = scalar_lea.vmem [#allocation7], %s334
        // Predicated region
        $region49: #{tpu_custom_call.1} parent=39 // pred_check
          %p336 = pneg %p115
        $region50: #{tpu_custom_call.1} parent=39 // pred_check_branch
          %338 = sbr.rel (%p336) target = $region52
        $region51: #{tpu_custom_call.1} parent=39 // pred_region
          %340 = dma.done %s333, 16
        $region52: #{tpu_custom_call.1} parent=39 // pred_fallthru
          _
        %s341 = sand.u32 %s128, 1
        %s342 = scalar_lea.sflag [#allocation9], %s341
        %s343 = sand.u32 %s128, 1
        %s344 = smul.addr %s343, 64
        %s345 = scalar_lea.vmem [#allocation8], %s344
        // Predicated region
        $region53: #{tpu_custom_call.1} parent=39 // pred_check
          %p346 = pneg %p141
        $region54: #{tpu_custom_call.1} parent=39 // pred_check_branch
          %348 = sbr.rel (%p346) target = $region56
        $region55: #{tpu_custom_call.1} parent=39 // pred_region
          %350 = dma.done %s342, 1024
        $region56: #{tpu_custom_call.1} parent=39 // pred_fallthru
          _
        %s351 = sand.u32 %s50, 1
        %s352 = scalar_lea.sflag [#allocation3], %s351
        %s353 = sand.u32 %s50, 1
        %s354 = smul.addr %s353, 16
        %s355 = scalar_lea.vmem [#allocation2], %s354
        %p356 = pneg %p63
        %p357 = pneg %p60
        %s358 = sand.u32 %s28, 1
        %s359 = scalar_lea.sflag [#allocation6], %s358
        %s360 = sand.u32 %s76, 1
        %s361 = smul.addr %s360, 64
        %s362 = scalar_lea.vmem [#allocation5], %s361
        %p363 = pneg %p89
        %p364 = pneg %p86
        %s365 = sand.u32 %s28, 1
        %s366 = scalar_lea.sflag [#allocation6], %s365
        %s367 = sand.u32 %s102, 1
        %s368 = scalar_lea.vmem [#allocation7], %s367
        %p369 = pneg %p115
        %p370 = pneg %p112
        %s371 = sand.u32 %s128, 1
        %s372 = scalar_lea.sflag [#allocation9], %s371
        %s373 = sand.u32 %s128, 1
        %s374 = smul.addr %s373, 64
        %s375 = scalar_lea.vmem [#allocation8], %s374
        %p376 = pneg %p141
        %p377 = pneg %p138
        %p378 = scmp.lt.s32.totalorder %s32, 1
        %s379 = scalar_select %p378, %s32, 1
        %s380 = scalar_lea.vmem %s4, %s379
        %p381 = pneg %p167
        %p382 = pneg %p164
        %p383 = pneg %p195
        %p384 = pneg %p192
        %s385 = sand.u32 %s182, 1
        %s386 = scalar_lea.sflag [#allocation4], %s385
        %s387 = sand.u32 %s182, 1
        %s388 = smul.addr %s387, 16
        %s389 = scalar_lea.vmem [#allocation10], %s388
        %s390 = smul.u32 2, %s33
        %p391 = scmp.lt.s32.totalorder %s32, 1
        %s392 = scalar_select %p391, %s32, 1
        %s393 = scalar_lea.vmem %s4, %s392
        %s394 = smul.u32 2, %s33
        %v395 = vld [vmem:[%s316] sm:$0xff]
        %v396 = vld [vmem:[%s316 + $0x8] sm:$0xff]
        %v397 = vmax.f32 %v395, 0.0
        %v398 = vmax.f32 %v396, 0.0
        %v399 = vld [vmem:[%s326] sm:$0xf]
        %v400 = vld [vmem:[%s326 + $0x4] sm:$0xf]
        %v401 = vld [vmem:[%s326 + $0x8] sm:$0xf]
        %v402 = vld [vmem:[%s326 + $0xc] sm:$0xf]
        %v403 = vld [vmem:[%s326 + $0x10] sm:$0xf]
        %v404 = vld [vmem:[%s326 + $0x14] sm:$0xf]
        %v405 = vld [vmem:[%s326 + $0x18] sm:$0xf]
        %v406 = vld [vmem:[%s326 + $0x1c] sm:$0xf]
        %v407 = vld [vmem:[%s326 + $0x20] sm:$0xf]
        %v408 = vld [vmem:[%s326 + $0x24] sm:$0xf]
        %v409 = vld [vmem:[%s326 + $0x28] sm:$0xf]
        %v410 = vld [vmem:[%s326 + $0x2c] sm:$0xf]
        %v411 = vld [vmem:[%s326 + $0x30] sm:$0xf]
        %v412 = vld [vmem:[%s326 + $0x34] sm:$0xf]
        %v413 = vld [vmem:[%s326 + $0x38] sm:$0xf]
        %v414 = vld [vmem:[%s326 + $0x3c] sm:$0xf]
        %v415 = vld [vmem:[%s335] sm:$0x1]
        %v416 = vpack.c.bf16 %v398, %v397
        %v433 = vunpack.c.l.b16 %v399
        %v434 = vunpack.c.l.b16 %v400
        %v435 = vunpack.c.l.b16 %v401
        %v436 = vunpack.c.l.b16 %v402
        %v437 = vunpack.c.l.b16 %v403
        %v438 = vunpack.c.l.b16 %v404
        %v439 = vunpack.c.l.b16 %v405
        %v440 = vunpack.c.l.b16 %v406
        %v441 = vunpack.c.l.b16 %v407
        %v442 = vunpack.c.l.b16 %v408
        %v443 = vunpack.c.l.b16 %v409
        %v444 = vunpack.c.l.b16 %v410
        %v445 = vunpack.c.l.b16 %v411
        %v446 = vunpack.c.l.b16 %v412
        %v447 = vunpack.c.l.b16 %v413
        %v448 = vunpack.c.l.b16 %v414
        %v449 = vpack.c.b16 %v434, %v433
        %v450 = vpack.c.b16 %v436, %v435
        %v451 = vpack.c.b16 %v438, %v437
        %v452 = vpack.c.b16 %v440, %v439
        %v453 = vpack.c.b16 %v442, %v441
        %v454 = vpack.c.b16 %v444, %v443
        %v455 = vpack.c.b16 %v446, %v445
        %v456 = vpack.c.b16 %v448, %v447
        %465 = vmatpush.bf16.msra.mxu0 %v456
        %466 = vmatpush.bf16.msra.mxu0 %v455
        %467 = vmatpush.bf16.msra.mxu0 %v454
        %468 = vmatpush.bf16.msra.mxu0 %v453
        %469 = vmatpush.bf16.msra.mxu0 %v452
        %470 = vmatpush.bf16.msra.mxu0 %v451
        %471 = vmatpush.bf16.msra.mxu0 %v450
        %472 = vmatpush.bf16.msra.mxu0 %v449
        %473 = vmatmul.bf16.gmra.mxu0 %v416
        %v474 = vpop.f32.mrf.mxu0
        %v475 = vadd.f32 0.0, %v474
        %v476 = vpop.f32.mrf.mxu0
        %v477 = vadd.f32 0.0, %v476
        %478 = vdwg.mxu0
        %v480 = vperm.slane %v415, 0
        %v482 = vadd.f32 %v480, %v475
        %v483 = vadd.f32 %v480, %v477
        %v484 = vld [vmem:[%s345] sm:$0xf]
        %v485 = vld [vmem:[%s345 + $0x4] sm:$0xf]
        %v486 = vld [vmem:[%s345 + $0x8] sm:$0xf]
        %v487 = vld [vmem:[%s345 + $0xc] sm:$0xf]
        %v488 = vld [vmem:[%s345 + $0x10] sm:$0xf]
        %v489 = vld [vmem:[%s345 + $0x14] sm:$0xf]
        %v490 = vld [vmem:[%s345 + $0x18] sm:$0xf]
        %v491 = vld [vmem:[%s345 + $0x1c] sm:$0xf]
        %v492 = vld [vmem:[%s345 + $0x20] sm:$0xf]
        %v493 = vld [vmem:[%s345 + $0x24] sm:$0xf]
        %v494 = vld [vmem:[%s345 + $0x28] sm:$0xf]
        %v495 = vld [vmem:[%s345 + $0x2c] sm:$0xf]
        %v496 = vld [vmem:[%s345 + $0x30] sm:$0xf]
        %v497 = vld [vmem:[%s345 + $0x34] sm:$0xf]
        %v498 = vld [vmem:[%s345 + $0x38] sm:$0xf]
        %v499 = vld [vmem:[%s345 + $0x3c] sm:$0xf]
        %v500 = vld [vmem:[%s393] sm:$0x1]
        %v501 = vpack.c.bf16 %v483, %v482
        %v518 = vunpack.c.l.b16 %v484
        %v519 = vunpack.c.l.b16 %v485
        %v520 = vunpack.c.l.b16 %v486
        %v521 = vunpack.c.l.b16 %v487
        %v522 = vunpack.c.l.b16 %v488
        %v523 = vunpack.c.l.b16 %v489
        %v524 = vunpack.c.l.b16 %v490
        %v525 = vunpack.c.l.b16 %v491
        %v526 = vunpack.c.l.b16 %v492
        %v527 = vunpack.c.l.b16 %v493
        %v528 = vunpack.c.l.b16 %v494
        %v529 = vunpack.c.l.b16 %v495
        %v530 = vunpack.c.l.b16 %v496
        %v531 = vunpack.c.l.b16 %v497
        %v532 = vunpack.c.l.b16 %v498
        %v533 = vunpack.c.l.b16 %v499
        %v534 = vpack.c.b16 %v519, %v518
        %v535 = vpack.c.b16 %v521, %v520
        %v536 = vpack.c.b16 %v523, %v522
        %v537 = vpack.c.b16 %v525, %v524
        %v538 = vpack.c.b16 %v527, %v526
        %v539 = vpack.c.b16 %v529, %v528
        %v540 = vpack.c.b16 %v531, %v530
        %v541 = vpack.c.b16 %v533, %v532
        %550 = vmatpush.bf16.msra.mxu0 %v541
        %551 = vmatpush.bf16.msra.mxu0 %v540
        %552 = vmatpush.bf16.msra.mxu0 %v539
        %553 = vmatpush.bf16.msra.mxu0 %v538
        %554 = vmatpush.bf16.msra.mxu0 %v537
        %555 = vmatpush.bf16.msra.mxu0 %v536
        %556 = vmatpush.bf16.msra.mxu0 %v535
        %557 = vmatpush.bf16.msra.mxu0 %v534
        %558 = vmatmul.bf16.gmra.mxu0 %v501
        %v559 = vpop.f32.mrf.mxu0
        %v560 = vadd.f32 0.0, %v559
        %v561 = vpop.f32.mrf.mxu0
        %v562 = vadd.f32 0.0, %v561
        %563 = vdwg.mxu0
        %v565 = vperm.slane %v500, 0
        %v567 = vadd.f32 %v565, %v560
        %v568 = vadd.f32 %v565, %v562
        %569 = vst [vmem:[%s389] sm:$0xff] %v567
        %570 = vst [vmem:[%s389 + $0x8] sm:$0xff] %v568
        %s571 = sand.u32 %s182, 1
        %s572 = scalar_lea.sflag [#allocation4], %s571
        %s573 = sand.u32 %s182, 1
        %s574 = smul.addr %s573, 16
        %s575 = scalar_lea.vmem [#allocation10], %s574
        // Predicated region
        $region57: #{tpu_custom_call.1} parent=39 // pred_check
          %p576 = pneg %p192
        $region58: #{tpu_custom_call.1} parent=39 // pred_check_branch
          %578 = sbr.rel (%p576) target = $region60
        $region59: #{tpu_custom_call.1} parent=39 // pred_region
          %s579 = smul.u32 2, %s33
          %581 = vsyncadd %s572, 0
          %s582 = smul.addr %s579, 2
          %s583 = sadd.s32 %s32, %s582
          %s584 = smul.addr %s583, 8
          %s585 = scalar_lea.hbm %s5, %s584
          %s586 = sshll.u32 %s575, 4
          %s587 = int_to_ptr.vmem [resolvable:$true] %s586
          %s588 = sshll.u32 %s585, 4
          %s589 = int_to_ptr.hbm [resolvable:$true] %s588
          %594 = dma.vmem_to_hbm [thread:$0]  %s587, 256, %s589, %s572, 128, 256, 8
        $region60: #{tpu_custom_call.1} parent=39 // pred_fallthru
          _
      $region40: #{tpu_custom_call.1} parent=5 // pred_fallthru
        _
      %p595 = scmp.le.s32.totalorder 2, %s23
      // Predicated region
      $region61: #{tpu_custom_call.1} parent=5 // pred_check
        %p596 = pneg %p595
      $region62: #{tpu_custom_call.1} parent=5 // pred_check_branch
        %598 = sbr.rel (%p596) target = $region64
      $region63: #{tpu_custom_call.1} parent=5 // pred_region
        %s599 = ssub.s32 %s23, 2
        // Predicated region
        $region65: #{tpu_custom_call.1} parent=63 // pred_check
          %p600 = pneg %p198
        $region66: #{tpu_custom_call.1} parent=63 // pred_check_branch
          %602 = sbr.rel (%p600) target = $region68
        $region67: #{tpu_custom_call.1} parent=63 // pred_region
          %s603 = sand.u32 %s183, 1
          %s604 = scalar_lea.sflag [#allocation4], %s603
          %s605 = sand.u32 %s183, 1
          %s606 = smul.addr %s605, 16
          %s607 = scalar_lea.vmem [#allocation10], %s606
          %609 = dma.done %s604, 256
        $region68: #{tpu_custom_call.1} parent=63 // pred_fallthru
          _
      $region64: #{tpu_custom_call.1} parent=5 // pred_fallthru
        _
    $region6: #{tpu_custom_call.1} parent=1 // loop_footer
      %s27 = sadd.s32 1, %s23
    $region7: #{tpu_custom_call.1} parent=1 // loop_footer_branch
      %22 = sbr.rel target = $region3
    $region8: #{tpu_custom_call.1} parent=1 // loop_exit
      _
    %610 = vsyncpa [#allocation3], 1
    %s611 = scalar_lea.sflag [#allocation3], 1
    %612 = vsyncpa %s611, 1
    %613 = vsyncpa [#allocation6], 1
    %s614 = scalar_lea.sflag [#allocation6], 1
    %615 = vsyncpa %s614, 1
    %616 = vsyncpa [#allocation9], 1
    %s617 = scalar_lea.sflag [#allocation9], 1
    %618 = vsyncpa %s617, 1
    %619 = vsyncpa [#allocation4], 1
    %s620 = scalar_lea.sflag [#allocation4], 1
    %621 = vsyncpa %s620, 1

</llo_original>
